<compile_context>
chip_gen: v6e
topology: v6e:2x2x1
jax: 0.10.0
libtpu: 0.0.40
codegen_flags: <defaults>
</compile_context>

<pallas_src>
import functools

import jax
import jax.numpy as jnp
from jax.experimental import pallas as pl
from jax.experimental.pallas import tpu as pltpu

LANE = 128      # vreg lane width
SUBLANE = 8     # vreg sublane count (f32)


def _round_up(n, m):
    return ((n + m - 1) // m) * m


# ----------------------------------------------------------------------------
# Parameter init (deterministic, PyTorch-Linear-style uniform fan-in init).
# Raw per-column params; weights stored as (n_in, n_out) so that y = x @ W + b.
# ----------------------------------------------------------------------------
def init_params(key, n_layers, sizes_per_task):
    params = []
    for c, sizes in enumerate(sizes_per_task):
        column = []
        for d in range(n_layers):
            n_in, n_out = sizes[d], sizes[d + 1]
            scale = 1.0 / float(n_in) ** 0.5
            key, k1, k2 = jax.random.split(key, 3)
            main = (
                jax.random.uniform(k1, (n_in, n_out), jnp.float32, -scale, scale),
                jax.random.uniform(k2, (n_out,), jnp.float32, -scale, scale),
            )
            laterals = []
            if d > 0:
                for _ in range(c):  # one lateral adapter per previous column
                    key, k3, k4 = jax.random.split(key, 3)
                    laterals.append((
                        jax.random.uniform(k3, (n_in, n_out), jnp.float32, -scale, scale),
                        jax.random.uniform(k4, (n_out,), jnp.float32, -scale, scale),
                    ))
            column.append({"main": main, "u": laterals})
        params.append(column)
    return params


# ----------------------------------------------------------------------------
# One-time packing of the whole PNN into per-layer block matrices.
#
# Activations are a single lane-concatenated slab per layer:
#     H_d = [ h_col0 | h_col1 | ... ] (+ zero lane padding up to a 128 multiple)
# Hidden layers pack columns at their TRUE width (compact); only the final
# layer keeps a 128-aligned per-column stride so the task select is lane-sliced.
# Layer d is exactly one matmul with a block-upper-triangular weight:
#     W_big[rows of col j inputs, cols of col i outputs] =
#         W_d_i   if j == i,   U_d_i_j  if j < i,   0 otherwise
# Biases (main + laterals) are pre-summed into the matching column slots.
# The post-ReLU "+ n_classes_per_task" constant of layer 0 is folded into
# layer 1's bias (it enters the next layer linearly); kept explicit only if
# n_layers == 1.  Padded lanes carry exactly 0 through every layer.
# ----------------------------------------------------------------------------
def prepare_packed_params(params, n_classes_per_task, n_layers):
    n_cols = len(params)
    sizes = [params[0][0]["main"][0].shape[0]]
    for d in range(n_layers):
        sizes.append(params[0][d]["main"][0].shape[1])
    for c in range(n_cols):  # packing assumes identical sizes across columns
        for d in range(n_layers):
            assert params[c][d]["main"][0].shape == (sizes[d], sizes[d + 1]), \
                "packed kernel assumes identical per-column layer sizes"

    in_dim = sizes[0]
    in_pad = _round_up(in_dim, LANE)
    c_pad = _round_up(sizes[-1], LANE)          # final per-column stride

    # per-layer output column offsets / slab widths
    col_off, slab_w = [], []
    for d in range(n_layers):
        n_out = sizes[d + 1]
        if d == n_layers - 1:                   # final layer: lane-aligned columns
            off = [i * c_pad for i in range(n_cols)]
            w = n_cols * c_pad
        else:                                   # hidden layers: compact packing
            off = [i * n_out for i in range(n_cols)]
            w = _round_up(n_cols * n_out, LANE)
        col_off.append(off)
        slab_w.append(w)

    weights = []
    for d in range(n_layers):
        n_out = sizes[d + 1]
        b_big = jnp.zeros((1, slab_w[d]), jnp.float32)
        if d == 0:
            W_big = jnp.zeros((in_pad, slab_w[0]), jnp.float32)
            for i in range(n_cols):
                W, b = params[i][0]["main"]
                cs = col_off[0][i]
                W_big = W_big.at[:in_dim, cs:cs + n_out].set(W)
                b_big = b_big.at[0, cs:cs + n_out].set(b)
        else:
            n_in = sizes[d]
            W_big = jnp.zeros((slab_w[d - 1], slab_w[d]), jnp.float32)
            for i in range(n_cols):
                W, b = params[i][d]["main"]
                cs = col_off[d][i]
                ri = col_off[d - 1][i]
                W_big = W_big.at[ri:ri + n_in, cs:cs + n_out].set(W)
                b_sum = b
                for j in range(i):
                    Wu, bu = params[i][d]["u"][j]
                    rj = col_off[d - 1][j]
                    W_big = W_big.at[rj:rj + n_in, cs:cs + n_out].set(Wu)
                    b_sum = b_sum + bu
                b_big = b_big.at[0, cs:cs + n_out].set(b_sum)
        weights.append([W_big, b_big])

    # post-ReLU scalar add of layer 0 (+ n_classes_in_task), zero in padded lanes
    post = jnp.zeros((1, slab_w[0]), jnp.float32)
    for i in range(n_cols):
        cs = col_off[0][i]
        post = post.at[0, cs:cs + sizes[1]].set(float(n_classes_per_task[i]))

    if n_layers > 1:
        # fold constant into layer 1's bias:  (h + post) @ W1 + b1 == h @ W1 + (b1 + post @ W1)
        W1, b1 = weights[1]
        weights[1][1] = b1 + post @ W1
        post = None                              # no explicit add needed in-kernel

    # bf16 weights (MXU-native everywhere); biases stay f32 (f32 VPU adds).
    weights = [(W.astype(jnp.bfloat16), b) for (W, b) in weights]

    return {
        "weights": weights,          # list of (W_big bf16, b_big f32), one per layer
        "post": post,                # (1, slab_w[0]) f32 or None (folded)
        "n_cols": n_cols,
        "n_classes": sizes[-1],
        "c_pad": c_pad,
        "in_dim": in_dim,
        "in_pad": in_pad,
        "slab_w": slab_w,
        "n_layers": n_layers,
    }


# ----------------------------------------------------------------------------
# Single fused kernel: all layers + per-task select, one batch tile per grid step.
# ----------------------------------------------------------------------------
def _make_fused_kernel(n_layers, n_cols, c_pad, has_post):
    def kernel(*refs):
        idx = 0
        labels_ref = refs[idx]; idx += 1         # (TB, 1) int32
        x_ref = refs[idx]; idx += 1              # (TB, in_pad) f32
        post_ref = None
        if has_post:
            post_ref = refs[idx]; idx += 1       # (1, slab_w[0]) f32
        wb = refs[idx: idx + 2 * n_layers]; idx += 2 * n_layers
        out_ref = refs[idx]                      # (TB, c_pad) f32

        h = x_ref[...]                           # f32
        for d in range(n_layers):
            w = wb[2 * d][...]                   # bf16
            b = wb[2 * d + 1][...]               # f32
            h = jnp.dot(h.astype(jnp.bfloat16), w,
                        preferred_element_type=jnp.float32) + b
            h = jnp.maximum(h, 0.0)
            if d == 0 and has_post:
                h = h + post_ref[...]            # + n_classes_in_task (n_layers==1 only)

        # per-sample task selection: clamp out-of-range labels to the last known
        # column (PyTorch fallback), then masked-accumulate one 128-lane block at
        # a time (low vreg pressure vs. a full where-chain).
        lab = labels_ref[...]
        lab = jnp.where((lab >= 0) & (lab < n_cols), lab, n_cols - 1)
        sel = jnp.zeros((h.shape[0], c_pad), jnp.float32)
        for t in range(n_cols):
            sel = sel + jnp.where(lab == t, h[:, t * c_pad:(t + 1) * c_pad], 0.0)
        out_ref[...] = sel.astype(out_ref.dtype)

    return kernel


def pnn_classifier_forward(x_img, task_labels, packed):
    n_layers = packed["n_layers"]
    n_cols = packed["n_cols"]
    C = packed["n_classes"]
    c_pad = packed["c_pad"]
    weights = packed["weights"]
    post = packed["post"]
    has_post = post is not None
    in_dim = packed["in_dim"]
    in_pad = packed["in_pad"]
    slab_w = packed["slab_w"]

    B = x_img.shape[0]
    x = x_img.reshape(B, -1).astype(jnp.float32)   # torch.flatten(x, start_dim=1)
    assert x.shape[1] == in_dim

    # Batch tiling: large tiles amortise the ~0.35us/step overhead, but keep
    # >= 2 grid steps when the batch allows so the "parallel" axis can shard
    # across v7x's two TensorCores.
    B_pad = _round_up(B, SUBLANE)
    TB = min(B_pad, 512)
    if B_pad // TB < 2 and B_pad >= 2 * SUBLANE:
        TB = _round_up(B_pad // 2, SUBLANE)
    B_pad = _round_up(B_pad, TB)

    labels = task_labels.astype(jnp.int32)
    if B_pad != B or in_pad != in_dim:
        x = jnp.pad(x, ((0, B_pad - B), (0, in_pad - in_dim)))
    if B_pad != B:
        labels = jnp.pad(labels, (0, B_pad - B))
    labels2d = labels[:, None]                     # (B_pad, 1)

    grid = (B_pad // TB,)

    in_specs = [
        pl.BlockSpec((TB, 1), lambda i: (i, 0)),          # task labels
        pl.BlockSpec((TB, in_pad), lambda i: (i, 0)),     # flattened, lane-padded input
    ]
    operands = [labels2d, x]
    if has_post:
        in_specs.append(pl.BlockSpec(post.shape, lambda i: (0, 0)))
        operands.append(post)
    for (W, b) in weights:                                # constant index maps:
        in_specs.append(pl.BlockSpec(W.shape, lambda i: (0, 0)))   # weights stay
        in_specs.append(pl.BlockSpec(b.shape, lambda i: (0, 0)))   # VMEM-resident
        operands += [W, b]

    kernel = _make_fused_kernel(n_layers, n_cols, c_pad, has_post)

    # VMEM budget: double-buffered weights/biases + per-tile I/O + activation slabs.
    w_bytes = sum(int(W.size) * W.dtype.itemsize + int(b.size) * b.dtype.itemsize
                  for W, b in weights)
    tile_io_bytes = 4 * TB * (1 + in_pad + c_pad)
    act_bytes = 4 * TB * max(slab_w)
    vmem_limit = max(32 * 1024 * 1024,
                     2 * w_bytes + 2 * tile_io_bytes + 4 * act_bytes + (8 << 20))

    out = pl.pallas_call(
        kernel,
        grid=grid,
        out_shape=jax.ShapeDtypeStruct((B_pad, c_pad), jnp.float32),
        in_specs=in_specs,
        out_specs=pl.BlockSpec((TB, c_pad), lambda i: (i, 0)),
        compiler_params=pltpu.CompilerParams(
            dimension_semantics=("parallel",),
            vmem_limit_bytes=int(vmem_limit)),
    )(*operands)

    return out[:B, :C]


# ----------------------------------------------------------------------------
# Pure-JAX reference (mirrors the PyTorch forward exactly, f32) for verification.
# ----------------------------------------------------------------------------
def pnn_reference(x_img, task_labels, params, n_classes_per_task, n_layers):
    B = x_img.shape[0]
    x = x_img.reshape(B, -1)
    n_cols = len(params)
    inputs = []
    for c in range(n_cols):
        W, b = params[c][0]["main"]
        inputs.append(jnp.maximum(x @ W + b, 0.0) + n_classes_per_task[c])
    for layer in range(1, n_layers):
        outputs = []
        for i in range(n_cols):
            W, b = params[i][layer]["main"]
            acc = inputs[i] @ W + b
            for j in range(i):
                Wu, bu = params[i][layer]["u"][j]
                acc = acc + inputs[j] @ Wu + bu
            outputs.append(jnp.maximum(acc, 0.0))
        inputs = outputs
    stacked = jnp.stack(inputs)
    return stacked[task_labels, jnp.arange(B)]


if __name__ == "__main__":
    key = jax.random.PRNGKey(0)

    n_layers = 3
    n_tasks = 2                      # number of PNN columns (calls to new_task)
    B, C, H, W = 8, 4, 4, 4          # small NCHW input
    in_dim = C * H * W
    sizes = [in_dim, 32, 32, 8]      # sizes passed to new_task (per column)
    sizes_per_task = [sizes for _ in range(n_tasks)]
    n_classes_per_task = [s[-1] for s in sizes_per_task]

    key, kp, kx = jax.random.split(key, 3)
    params = init_params(kp, n_layers, sizes_per_task)
    packed = prepare_packed_params(params, n_classes_per_task, n_layers)  # once, not per-forward

    x = jax.random.normal(kx, (B, C, H, W), jnp.float32)
    task_labels = jnp.array([0, 1, 0, 1, 1, 0, 1, 0], jnp.int32)

    fwd = jax.jit(functools.partial(pnn_classifier_forward, packed=packed))
    y = fwd(x, task_labels)
    y = jax.block_until_ready(y)

    y_ref = pnn_reference(x, task_labels, params, n_classes_per_task, n_layers)
    assert y.shape == (B, n_classes_per_task[-1]), y.shape
    # Tolerance accounts for bf16 weights/activations (f32 accumulation) vs f32 ref.
    assert jnp.allclose(y, y_ref, atol=1e-1, rtol=5e-2), "mismatch vs reference"

    print("KERNEL_OK")
</pallas_src>

<mosaic_0001>
module attributes {stable_mosaic.version = 11 : i64} {
  func.func @kernel(%arg0: i32, %arg1: memref<8x1xi32, #tpu.memory_space<vmem>>, %arg2: memref<8x128xf32, #tpu.memory_space<vmem>>, %arg3: memref<128x128xbf16, #tpu.memory_space<vmem>>, %arg4: memref<1x128xf32, #tpu.memory_space<vmem>>, %arg5: memref<128x128xbf16, #tpu.memory_space<vmem>>, %arg6: memref<1x128xf32, #tpu.memory_space<vmem>>, %arg7: memref<128x256xbf16, #tpu.memory_space<vmem>>, %arg8: memref<1x256xf32, #tpu.memory_space<vmem>>, %arg9: memref<8x128xf32, #tpu.memory_space<vmem>>) attributes {dimension_semantics = [#tpu.dimension_semantics<parallel>], iteration_bounds = array<i64: 1>, scalar_prefetch = 0 : i64, scratch_operands = 0 : i64, tpu.core_type = #tpu.core_type<tc>, window_params = [{transform_indices = @transform_0, window_bounds = array<i64: 8, 1>}, {transform_indices = @transform_1, window_bounds = array<i64: 8, 128>}, {pipeline_mode = #tpu.pipeline_mode<synchronous>, transform_indices = @transform_2, window_bounds = array<i64: 128, 128>}, {pipeline_mode = #tpu.pipeline_mode<synchronous>, transform_indices = @transform_3, window_bounds = array<i64: 1, 128>}, {pipeline_mode = #tpu.pipeline_mode<synchronous>, transform_indices = @transform_4, window_bounds = array<i64: 128, 128>}, {pipeline_mode = #tpu.pipeline_mode<synchronous>, transform_indices = @transform_5, window_bounds = array<i64: 1, 128>}, {pipeline_mode = #tpu.pipeline_mode<synchronous>, transform_indices = @transform_6, window_bounds = array<i64: 128, 256>}, {pipeline_mode = #tpu.pipeline_mode<synchronous>, transform_indices = @transform_7, window_bounds = array<i64: 1, 256>}, {transform_indices = @transform_8, window_bounds = array<i64: 8, 128>}]} {
    %c0 = arith.constant 0 : index
    %c0_0 = arith.constant 0 : index
    %0 = vector.load %arg2[%c0, %c0_0] : memref<8x128xf32, #tpu.memory_space<vmem>>, vector<8x128xf32>
    %c0_1 = arith.constant 0 : index
    %c0_2 = arith.constant 0 : index
    %1 = vector.load %arg3[%c0_1, %c0_2] : memref<128x128xbf16, #tpu.memory_space<vmem>>, vector<128x128xbf16>
    %c0_3 = arith.constant 0 : index
    %c0_4 = arith.constant 0 : index
    %2 = vector.load %arg4[%c0_3, %c0_4] : memref<1x128xf32, #tpu.memory_space<vmem>>, vector<1x128xf32>
    %3 = arith.truncf %0 : vector<8x128xf32> to vector<8x128xbf16>
    %cst = arith.constant dense<0.000000e+00> : vector<8x128xf32>
    %4 = tpu.matmul %3, %1, %cst {dimension_numbers = #tpu.dot_dimension_numbers<[1], [0], [0], [1], [0, 0, 1, 1], [], []>} : vector<8x128xbf16>, vector<128x128xbf16>, vector<8x128xf32> -> vector<8x128xf32>
    %5 = vector.broadcast %2 : vector<1x128xf32> to vector<8x128xf32>
    %6 = arith.addf %4, %5 : vector<8x128xf32>
    %cst_5 = arith.constant 0.000000e+00 : f32
    %7 = vector.broadcast %cst_5 : f32 to vector<8x128xf32>
    %8 = arith.maximumf %6, %7 : vector<8x128xf32>
    %c0_6 = arith.constant 0 : index
    %c0_7 = arith.constant 0 : index
    %9 = vector.load %arg5[%c0_6, %c0_7] : memref<128x128xbf16, #tpu.memory_space<vmem>>, vector<128x128xbf16>
    %c0_8 = arith.constant 0 : index
    %c0_9 = arith.constant 0 : index
    %10 = vector.load %arg6[%c0_8, %c0_9] : memref<1x128xf32, #tpu.memory_space<vmem>>, vector<1x128xf32>
    %11 = arith.truncf %8 : vector<8x128xf32> to vector<8x128xbf16>
    %cst_10 = arith.constant dense<0.000000e+00> : vector<8x128xf32>
    %12 = tpu.matmul %11, %9, %cst_10 {dimension_numbers = #tpu.dot_dimension_numbers<[1], [0], [0], [1], [0, 0, 1, 1], [], []>} : vector<8x128xbf16>, vector<128x128xbf16>, vector<8x128xf32> -> vector<8x128xf32>
    %13 = vector.broadcast %10 : vector<1x128xf32> to vector<8x128xf32>
    %14 = arith.addf %12, %13 : vector<8x128xf32>
    %cst_11 = arith.constant 0.000000e+00 : f32
    %15 = vector.broadcast %cst_11 : f32 to vector<8x128xf32>
    %16 = arith.maximumf %14, %15 : vector<8x128xf32>
    %c0_12 = arith.constant 0 : index
    %c0_13 = arith.constant 0 : index
    %17 = vector.load %arg7[%c0_12, %c0_13] : memref<128x256xbf16, #tpu.memory_space<vmem>>, vector<128x256xbf16>
    %c0_14 = arith.constant 0 : index
    %c0_15 = arith.constant 0 : index
    %18 = vector.load %arg8[%c0_14, %c0_15] : memref<1x256xf32, #tpu.memory_space<vmem>>, vector<1x256xf32>
    %19 = arith.truncf %16 : vector<8x128xf32> to vector<8x128xbf16>
    %cst_16 = arith.constant dense<0.000000e+00> : vector<8x256xf32>
    %20 = tpu.matmul %19, %17, %cst_16 {dimension_numbers = #tpu.dot_dimension_numbers<[1], [0], [0], [1], [0, 0, 1, 1], [], []>} : vector<8x128xbf16>, vector<128x256xbf16>, vector<8x256xf32> -> vector<8x256xf32>
    %21 = vector.broadcast %18 : vector<1x256xf32> to vector<8x256xf32>
    %22 = arith.addf %20, %21 : vector<8x256xf32>
    %cst_17 = arith.constant 0.000000e+00 : f32
    %23 = vector.broadcast %cst_17 : f32 to vector<8x256xf32>
    %24 = arith.maximumf %22, %23 : vector<8x256xf32>
    %c0_18 = arith.constant 0 : index
    %c0_19 = arith.constant 0 : index
    %25 = vector.load %arg1[%c0_18, %c0_19] : memref<8x1xi32, #tpu.memory_space<vmem>>, vector<8x1xi32>
    %c0_i32 = arith.constant 0 : i32
    %26 = vector.broadcast %c0_i32 : i32 to vector<8x1xi32>
    %27 = arith.cmpi sge, %25, %26 : vector<8x1xi32>
    %c2_i32 = arith.constant 2 : i32
    %28 = vector.broadcast %c2_i32 : i32 to vector<8x1xi32>
    %29 = arith.cmpi slt, %25, %28 : vector<8x1xi32>
    %30 = arith.andi %27, %29 : vector<8x1xi1>
    %c1_i32 = arith.constant 1 : i32
    %31 = vector.broadcast %c1_i32 : i32 to vector<8x1xi32>
    %32 = arith.select %30, %25, %31 : vector<8x1xi1>, vector<8x1xi32>
    %cst_20 = arith.constant 0.000000e+00 : f32
    %33 = vector.broadcast %cst_20 : f32 to vector<8x128xf32>
    %c0_i32_21 = arith.constant 0 : i32
    %34 = vector.broadcast %c0_i32_21 : i32 to vector<8x1xi32>
    %35 = arith.cmpi eq, %32, %34 : vector<8x1xi32>
    %36 = vector.extract_strided_slice %24 {offsets = [0, 0], sizes = [8, 128], strides = [1, 1]} : vector<8x256xf32> to vector<8x128xf32>
    %cst_22 = arith.constant 0.000000e+00 : f32
    %37 = vector.shape_cast %35 : vector<8x1xi1> to vector<8x1xi1>
    %38 = vector.broadcast %37 : vector<8x1xi1> to vector<8x128xi1>
    %39 = vector.broadcast %cst_22 : f32 to vector<8x128xf32>
    %40 = arith.select %38, %36, %39 : vector<8x128xi1>, vector<8x128xf32>
    %41 = arith.addf %33, %40 : vector<8x128xf32>
    %c1_i32_23 = arith.constant 1 : i32
    %42 = vector.broadcast %c1_i32_23 : i32 to vector<8x1xi32>
    %43 = arith.cmpi eq, %32, %42 : vector<8x1xi32>
    %44 = vector.extract_strided_slice %24 {offsets = [0, 128], sizes = [8, 128], strides = [1, 1]} : vector<8x256xf32> to vector<8x128xf32>
    %cst_24 = arith.constant 0.000000e+00 : f32
    %45 = vector.shape_cast %43 : vector<8x1xi1> to vector<8x1xi1>
    %46 = vector.broadcast %45 : vector<8x1xi1> to vector<8x128xi1>
    %47 = vector.broadcast %cst_24 : f32 to vector<8x128xf32>
    %48 = arith.select %46, %44, %47 : vector<8x128xi1>, vector<8x128xf32>
    %49 = arith.addf %41, %48 : vector<8x128xf32>
    %c0_25 = arith.constant 0 : index
    %c0_26 = arith.constant 0 : index
    %50 = vector.load %arg9[%c0_25, %c0_26] : memref<8x128xf32, #tpu.memory_space<vmem>>, vector<8x128xf32>
    tpu.vector_store %arg9[%c0_25, %c0_26], %49 {strides = array<i32>} : memref<8x128xf32, #tpu.memory_space<vmem>>, vector<8x128xf32>,
    return
  }
  func.func @transform_0(%arg0: i32) -> (i32, i32) {
    %c0_i32 = arith.constant 0 : i32
    %c0_i32_0 = arith.constant 0 : i32
    return %arg0, %c0_i32 : i32, i32
  }
  func.func @transform_1(%arg0: i32) -> (i32, i32) {
    %c0_i32 = arith.constant 0 : i32
    %c0_i32_0 = arith.constant 0 : i32
    return %arg0, %c0_i32 : i32, i32
  }
  func.func @transform_2(%arg0: i32) -> (i32, i32) {
    %c0_i32 = arith.constant 0 : i32
    %c0_i32_0 = arith.constant 0 : i32
    %c0_i32_1 = arith.constant 0 : i32
    return %c0_i32, %c0_i32_0 : i32, i32
  }
  func.func @transform_3(%arg0: i32) -> (i32, i32) {
    %c0_i32 = arith.constant 0 : i32
    %c0_i32_0 = arith.constant 0 : i32
    %c0_i32_1 = arith.constant 0 : i32
    return %c0_i32, %c0_i32_0 : i32, i32
  }
  func.func @transform_4(%arg0: i32) -> (i32, i32) {
    %c0_i32 = arith.constant 0 : i32
    %c0_i32_0 = arith.constant 0 : i32
    %c0_i32_1 = arith.constant 0 : i32
    return %c0_i32, %c0_i32_0 : i32, i32
  }
  func.func @transform_5(%arg0: i32) -> (i32, i32) {
    %c0_i32 = arith.constant 0 : i32
    %c0_i32_0 = arith.constant 0 : i32
    %c0_i32_1 = arith.constant 0 : i32
    return %c0_i32, %c0_i32_0 : i32, i32
  }
  func.func @transform_6(%arg0: i32) -> (i32, i32) {
    %c0_i32 = arith.constant 0 : i32
    %c0_i32_0 = arith.constant 0 : i32
    %c0_i32_1 = arith.constant 0 : i32
    return %c0_i32, %c0_i32_0 : i32, i32
  }
  func.func @transform_7(%arg0: i32) -> (i32, i32) {
    %c0_i32 = arith.constant 0 : i32
    %c0_i32_0 = arith.constant 0 : i32
    %c0_i32_1 = arith.constant 0 : i32
    return %c0_i32, %c0_i32_0 : i32, i32
  }
  func.func @transform_8(%arg0: i32) -> (i32, i32) {
    %c0_i32 = arith.constant 0 : i32
    %c0_i32_0 = arith.constant 0 : i32
    return %arg0, %c0_i32 : i32, i32
  }
}

</mosaic_0001>

<llo_original>
// kernel: pnn_classifier_forward.1
$region0: #{pnn_classifier_forward.1}
  #allocation0 [shape = 'u32[]', space=smem, size = 0x4, offset = 0x4, fixed_abs, tag = 'smem constant byte address 0x4 - core index']
  #allocation1 [shape = 'u32[144,128]{1,0:T(1,128)}', space=vmem, size = 0x12000, scoped, tag = 'internal scratch']
  %s0 = inlined_call_operand.vmem [shape: s32[8,1], index: 0, kind: input, shape index: {}]
  %s1 = inlined_call_operand.vmem [shape: f32[8,128], index: 1, kind: input, shape index: {}]
  %s2 = inlined_call_operand.hbm [shape: bf16[128,128], index: 2, kind: input, shape index: {}]
  %s3 = inlined_call_operand.vmem [shape: f32[1,128], index: 3, kind: input, shape index: {}]
  %s4 = inlined_call_operand.vmem [shape: bf16[128,128], index: 4, kind: input, shape index: {}]
  %s5 = inlined_call_operand.vmem [shape: f32[1,128], index: 5, kind: input, shape index: {}]
  %s6 = inlined_call_operand.hbm [shape: bf16[128,256], index: 6, kind: input, shape index: {}]
  %s7 = inlined_call_operand.vmem [shape: f32[1,256], index: 7, kind: input, shape index: {}]
  %s8 = inlined_call_operand.hbm [shape: f32[8,128], index: 8, kind: output, shape index: {}]
  %s9 = sld [smem:[#allocation0]]
  $region50: #{pnn_classifier_forward.1} parent=0
    _
  %s11 = ssub.s32 1, %s9
  %s12 = scalar_select 0, %s11, %s9
  $region1: #{pnn_classifier_forward.1} parent=0
    #allocation2 [shape = 'u8[32768]{0}', space=vmem, size = 0x8000, scoped, tag = 'input window, operand 2, single buffered']
    #allocation3 [shape = 's32[1]{0}', space=sflag, size = 0x4, scoped, tag = 'scoped memory for pnn_classifier_forward.1']
    #allocation4 [shape = 's32[1]{0}', space=sflag, size = 0x4, scoped, tag = 'scoped memory for pnn_classifier_forward.1']
    #allocation5 [shape = 'u8[65536]{0}', space=vmem, size = 0x10000, scoped, tag = 'input window, operand 6, single buffered']
    #allocation6 [shape = 's32[1]{0}', space=sflag, size = 0x4, scoped, tag = 'scoped memory for pnn_classifier_forward.1']
    #allocation7 [shape = 'u8[4096]{0}', space=vmem, size = 0x1000, scoped, tag = 'output window, operand 0, single buffered']
    %13 = vsyncpa [#allocation3], 0
    %14 = vsyncpa [#allocation6], 0
    %15 = vsyncpa [#allocation4], 0
    // Predicated region
    $region2: #{pnn_classifier_forward.1} parent=1 // pred_check
      _
    $region3: #{pnn_classifier_forward.1} parent=1 // pred_check_branch
      %17 = sbr.rel (0) target = $region5
    $region4: #{pnn_classifier_forward.1} parent=1 // pred_region
      _
    $region5: #{pnn_classifier_forward.1} parent=1 // pred_fallthru
      _
    // Predicated region
    $region6: #{pnn_classifier_forward.1} parent=1 // pred_check
      _
    $region7: #{pnn_classifier_forward.1} parent=1 // pred_check_branch
      %19 = sbr.rel (0) target = $region9
    $region8: #{pnn_classifier_forward.1} parent=1 // pred_region
      _
    $region9: #{pnn_classifier_forward.1} parent=1 // pred_fallthru
      _
    // Predicated region
    $region10: #{pnn_classifier_forward.1} parent=1 // pred_check
      _
    $region11: #{pnn_classifier_forward.1} parent=1 // pred_check_branch
      %21 = sbr.rel (0) target = $region13
    $region12: #{pnn_classifier_forward.1} parent=1 // pred_region
      %s23 = ssub.s32 1024, 1024
      %24 = vsyncadd [#allocation3], %s23
      %s25 = sshll.u32 [#allocation2], 4
      %s26 = int_to_ptr.vmem [resolvable:$true] %s25
      %31 = dma.hbm_to_vmem [thread:$0]  %s2, 1024, %s26, [#allocation3], 64, 64, 4
    $region13: #{pnn_classifier_forward.1} parent=1 // pred_fallthru
      _
    // Predicated region
    $region14: #{pnn_classifier_forward.1} parent=1 // pred_check
      _
    $region15: #{pnn_classifier_forward.1} parent=1 // pred_check_branch
      %33 = sbr.rel (0) target = $region17
    $region16: #{pnn_classifier_forward.1} parent=1 // pred_region
      _
    $region17: #{pnn_classifier_forward.1} parent=1 // pred_fallthru
      _
    // Predicated region
    $region18: #{pnn_classifier_forward.1} parent=1 // pred_check
      _
    $region19: #{pnn_classifier_forward.1} parent=1 // pred_check_branch
      %35 = sbr.rel (0) target = $region21
    $region20: #{pnn_classifier_forward.1} parent=1 // pred_region
      _
    $region21: #{pnn_classifier_forward.1} parent=1 // pred_fallthru
      _
    // Predicated region
    $region22: #{pnn_classifier_forward.1} parent=1 // pred_check
      _
    $region23: #{pnn_classifier_forward.1} parent=1 // pred_check_branch
      %37 = sbr.rel (0) target = $region25
    $region24: #{pnn_classifier_forward.1} parent=1 // pred_region
      _
    $region25: #{pnn_classifier_forward.1} parent=1 // pred_fallthru
      _
    // Predicated region
    $region26: #{pnn_classifier_forward.1} parent=1 // pred_check
      _
    $region27: #{pnn_classifier_forward.1} parent=1 // pred_check_branch
      %39 = sbr.rel (0) target = $region29
    $region28: #{pnn_classifier_forward.1} parent=1 // pred_region
      %s41 = ssub.s32 2048, 2048
      %42 = vsyncadd [#allocation6], %s41
      %s43 = sshll.u32 [#allocation5], 4
      %s44 = int_to_ptr.vmem [resolvable:$true] %s43
      %49 = dma.hbm_to_vmem [thread:$0]  %s6, 2048, %s44, [#allocation6], 128, 128, 8
    $region29: #{pnn_classifier_forward.1} parent=1 // pred_fallthru
      _
    // Predicated region
    $region30: #{pnn_classifier_forward.1} parent=1 // pred_check
      _
    $region31: #{pnn_classifier_forward.1} parent=1 // pred_check_branch
      %51 = sbr.rel (0) target = $region33
    $region32: #{pnn_classifier_forward.1} parent=1 // pred_region
      _
    $region33: #{pnn_classifier_forward.1} parent=1 // pred_fallthru
      _
    // Predicated region
    $region34: #{pnn_classifier_forward.1} parent=1 // pred_check
      _
    $region35: #{pnn_classifier_forward.1} parent=1 // pred_check_branch
      %53 = sbr.rel (0) target = $region37
    $region36: #{pnn_classifier_forward.1} parent=1 // pred_region
      %54 = dma.done [#allocation3], 1024
    $region37: #{pnn_classifier_forward.1} parent=1 // pred_fallthru
      _
    // Predicated region
    $region38: #{pnn_classifier_forward.1} parent=1 // pred_check
      _
    $region39: #{pnn_classifier_forward.1} parent=1 // pred_check_branch
      %56 = sbr.rel (0) target = $region41
    $region40: #{pnn_classifier_forward.1} parent=1 // pred_region
      %57 = dma.done [#allocation6], 2048
    $region41: #{pnn_classifier_forward.1} parent=1 // pred_fallthru
      _
    %v59 = vld [vmem:[%s1] sm:$0xff]
    %v60 = vld [vmem:[#allocation2] sm:$0xf]
    %v61 = vld [vmem:[#allocation2 + $0x4] sm:$0xf]
    %v62 = vld [vmem:[#allocation2 + $0x8] sm:$0xf]
    %v63 = vld [vmem:[#allocation2 + $0xc] sm:$0xf]
    %v64 = vld [vmem:[#allocation2 + $0x10] sm:$0xf]
    %v65 = vld [vmem:[#allocation2 + $0x14] sm:$0xf]
    %v66 = vld [vmem:[#allocation2 + $0x18] sm:$0xf]
    %v67 = vld [vmem:[#allocation2 + $0x1c] sm:$0xf]
    %v68 = vld [vmem:[#allocation2 + $0x20] sm:$0xf]
    %v69 = vld [vmem:[#allocation2 + $0x24] sm:$0xf]
    %v70 = vld [vmem:[#allocation2 + $0x28] sm:$0xf]
    %v71 = vld [vmem:[#allocation2 + $0x2c] sm:$0xf]
    %v72 = vld [vmem:[#allocation2 + $0x30] sm:$0xf]
    %v73 = vld [vmem:[#allocation2 + $0x34] sm:$0xf]
    %v74 = vld [vmem:[#allocation2 + $0x38] sm:$0xf]
    %v75 = vld [vmem:[#allocation2 + $0x3c] sm:$0xf]
    %v76 = vld [vmem:[%s3] sm:$0x1]
    %v77 = vpack.c.bf16 %v59, %v59
    %v79 = vlaneseq
    %v80 = vshrl.u32 %v79, 7
    %v81 = vsub.s32 0, %v80
    %v82 = vrot.slane %v76, %v81
    %v100 = vunpack.c.l.b16 %v60
    %v101 = vunpack.c.l.b16 %v61
    %v102 = vunpack.c.l.b16 %v62
    %v103 = vunpack.c.l.b16 %v63
    %v104 = vunpack.c.l.b16 %v64
    %v105 = vunpack.c.l.b16 %v65
    %v106 = vunpack.c.l.b16 %v66
    %v107 = vunpack.c.l.b16 %v67
    %v108 = vunpack.c.l.b16 %v68
    %v109 = vunpack.c.l.b16 %v69
    %v110 = vunpack.c.l.b16 %v70
    %v111 = vunpack.c.l.b16 %v71
    %v112 = vunpack.c.l.b16 %v72
    %v113 = vunpack.c.l.b16 %v73
    %v114 = vunpack.c.l.b16 %v74
    %v115 = vunpack.c.l.b16 %v75
    %v116 = vpack.c.b16 %v101, %v100
    %v117 = vpack.c.b16 %v103, %v102
    %v118 = vpack.c.b16 %v105, %v104
    %v119 = vpack.c.b16 %v107, %v106
    %v120 = vpack.c.b16 %v109, %v108
    %v121 = vpack.c.b16 %v111, %v110
    %v122 = vpack.c.b16 %v113, %v112
    %v123 = vpack.c.b16 %v115, %v114
    %132 = vmatprep.subr.bf16.mxu0 0
    %133 = vmatpush1.bf16.msra.mxu0 %v123
    %134 = vmatprep.subr.bf16.mxu0 0
    %135 = vmatpush1.bf16.msra.mxu0 %v122
    %136 = vmatprep.subr.bf16.mxu0 0
    %137 = vmatpush1.bf16.msra.mxu0 %v121
    %138 = vmatprep.subr.bf16.mxu0 0
    %139 = vmatpush1.bf16.msra.mxu0 %v120
    %140 = vmatprep.subr.bf16.mxu0 0
    %141 = vmatpush1.bf16.msra.mxu0 %v119
    %142 = vmatprep.subr.bf16.mxu0 0
    %143 = vmatpush1.bf16.msra.mxu0 %v118
    %144 = vmatprep.subr.bf16.mxu0 0
    %145 = vmatpush1.bf16.msra.mxu0 %v117
    %146 = vmatprep.subr.bf16.mxu0 0
    %147 = vmatpush1.bf16.msra.mxu0 %v116
    %148 = vmatprep.subr.bf16.mxu0 0
    %149 = vmatpush2.bf16.msra.mxu0 0
    %150 = vmatprep.subr.bf16.mxu0 0
    %151 = vmatpush2.bf16.msra.mxu0 0
    %152 = vmatprep.subr.bf16.mxu0 0
    %153 = vmatpush2.bf16.msra.mxu0 0
    %154 = vmatprep.subr.bf16.mxu0 0
    %155 = vmatpush2.bf16.msra.mxu0 0
    %156 = vmatprep.subr.bf16.mxu0 0
    %157 = vmatpush2.bf16.msra.mxu0 0
    %158 = vmatprep.subr.bf16.mxu0 0
    %159 = vmatpush2.bf16.msra.mxu0 0
    %160 = vmatprep.subr.bf16.mxu0 0
    %161 = vmatpush2.bf16.msra.mxu0 0
    %162 = vmatprep.subr.bf16.mxu0 0
    %163 = vmatpush2.bf16.msra.mxu0 0
    %164 = vmatprep.mubr.bf16.mxu0 0
    %165 = vmatmul.mubr.bf16.gmra.mxu0 %v77
    %v166 = vpop.f32.mrf.mxu0
    %v167 = vadd.f32 %v82, %v166
    %v168 = vpop.f32.mrf.mxu0
    %v169 = vpop.f32.mrf.mxu0
    %v170 = vpop.f32.mrf.mxu0
    %171 = vdwg.mxu0
    %v172 = vmax.f32 %v167, 0.0
    %v173 = vld [vmem:[%s4] sm:$0xf]
    %v174 = vld [vmem:[%s4 + $0x4] sm:$0xf]
    %v175 = vld [vmem:[%s4 + $0x8] sm:$0xf]
    %v176 = vld [vmem:[%s4 + $0xc] sm:$0xf]
    %v177 = vld [vmem:[%s4 + $0x10] sm:$0xf]
    %v178 = vld [vmem:[%s4 + $0x14] sm:$0xf]
    %v179 = vld [vmem:[%s4 + $0x18] sm:$0xf]
    %v180 = vld [vmem:[%s4 + $0x1c] sm:$0xf]
    %v181 = vld [vmem:[%s4 + $0x20] sm:$0xf]
    %v182 = vld [vmem:[%s4 + $0x24] sm:$0xf]
    %v183 = vld [vmem:[%s4 + $0x28] sm:$0xf]
    %v184 = vld [vmem:[%s4 + $0x2c] sm:$0xf]
    %v185 = vld [vmem:[%s4 + $0x30] sm:$0xf]
    %v186 = vld [vmem:[%s4 + $0x34] sm:$0xf]
    %v187 = vld [vmem:[%s4 + $0x38] sm:$0xf]
    %v188 = vld [vmem:[%s4 + $0x3c] sm:$0xf]
    %v189 = vld [vmem:[%s5] sm:$0x1]
    %v190 = vpack.c.bf16 %v172, %v172
    %v192 = vlaneseq
    %v193 = vshrl.u32 %v192, 7
    %v194 = vsub.s32 0, %v193
    %v195 = vrot.slane %v189, %v194
    %v213 = vunpack.c.l.b16 %v173
    %v214 = vunpack.c.l.b16 %v174
    %v215 = vunpack.c.l.b16 %v175
    %v216 = vunpack.c.l.b16 %v176
    %v217 = vunpack.c.l.b16 %v177
    %v218 = vunpack.c.l.b16 %v178
    %v219 = vunpack.c.l.b16 %v179
    %v220 = vunpack.c.l.b16 %v180
    %v221 = vunpack.c.l.b16 %v181
    %v222 = vunpack.c.l.b16 %v182
    %v223 = vunpack.c.l.b16 %v183
    %v224 = vunpack.c.l.b16 %v184
    %v225 = vunpack.c.l.b16 %v185
    %v226 = vunpack.c.l.b16 %v186
    %v227 = vunpack.c.l.b16 %v187
    %v228 = vunpack.c.l.b16 %v188
    %v229 = vpack.c.b16 %v214, %v213
    %v230 = vpack.c.b16 %v216, %v215
    %v231 = vpack.c.b16 %v218, %v217
    %v232 = vpack.c.b16 %v220, %v219
    %v233 = vpack.c.b16 %v222, %v221
    %v234 = vpack.c.b16 %v224, %v223
    %v235 = vpack.c.b16 %v226, %v225
    %v236 = vpack.c.b16 %v228, %v227
    %245 = vmatprep.subr.bf16.mxu0 0
    %246 = vmatpush1.bf16.msra.mxu0 %v236
    %247 = vmatprep.subr.bf16.mxu0 0
    %248 = vmatpush1.bf16.msra.mxu0 %v235
    %249 = vmatprep.subr.bf16.mxu0 0
    %250 = vmatpush1.bf16.msra.mxu0 %v234
    %251 = vmatprep.subr.bf16.mxu0 0
    %252 = vmatpush1.bf16.msra.mxu0 %v233
    %253 = vmatprep.subr.bf16.mxu0 0
    %254 = vmatpush1.bf16.msra.mxu0 %v232
    %255 = vmatprep.subr.bf16.mxu0 0
    %256 = vmatpush1.bf16.msra.mxu0 %v231
    %257 = vmatprep.subr.bf16.mxu0 0
    %258 = vmatpush1.bf16.msra.mxu0 %v230
    %259 = vmatprep.subr.bf16.mxu0 0
    %260 = vmatpush1.bf16.msra.mxu0 %v229
    %261 = vmatprep.subr.bf16.mxu0 0
    %262 = vmatpush2.bf16.msra.mxu0 0
    %263 = vmatprep.subr.bf16.mxu0 0
    %264 = vmatpush2.bf16.msra.mxu0 0
    %265 = vmatprep.subr.bf16.mxu0 0
    %266 = vmatpush2.bf16.msra.mxu0 0
    %267 = vmatprep.subr.bf16.mxu0 0
    %268 = vmatpush2.bf16.msra.mxu0 0
    %269 = vmatprep.subr.bf16.mxu0 0
    %270 = vmatpush2.bf16.msra.mxu0 0
    %271 = vmatprep.subr.bf16.mxu0 0
    %272 = vmatpush2.bf16.msra.mxu0 0
    %273 = vmatprep.subr.bf16.mxu0 0
    %274 = vmatpush2.bf16.msra.mxu0 0
    %275 = vmatprep.subr.bf16.mxu0 0
    %276 = vmatpush2.bf16.msra.mxu0 0
    %277 = vmatprep.mubr.bf16.mxu0 0
    %278 = vmatmul.mubr.bf16.gmra.mxu0 %v190
    %v279 = vpop.f32.mrf.mxu0
    %v280 = vadd.f32 %v195, %v279
    %v281 = vpop.f32.mrf.mxu0
    %v282 = vpop.f32.mrf.mxu0
    %v283 = vpop.f32.mrf.mxu0
    %284 = vdwg.mxu0
    %v285 = vmax.f32 %v280, 0.0
    %v286 = vld [vmem:[#allocation5] sm:$0xff]
    %v287 = vld [vmem:[#allocation5 + $0x8] sm:$0xff]
    %v288 = vld [vmem:[#allocation5 + $0x10] sm:$0xff]
    %v289 = vld [vmem:[#allocation5 + $0x18] sm:$0xff]
    %v290 = vld [vmem:[#allocation5 + $0x20] sm:$0xff]
    %v291 = vld [vmem:[#allocation5 + $0x28] sm:$0xff]
    %v292 = vld [vmem:[#allocation5 + $0x30] sm:$0xff]
    %v293 = vld [vmem:[#allocation5 + $0x38] sm:$0xff]
    %v294 = vld [vmem:[#allocation5 + $0x40] sm:$0xff]
    %v295 = vld [vmem:[#allocation5 + $0x48] sm:$0xff]
    %v296 = vld [vmem:[#allocation5 + $0x50] sm:$0xff]
    %v297 = vld [vmem:[#allocation5 + $0x58] sm:$0xff]
    %v298 = vld [vmem:[#allocation5 + $0x60] sm:$0xff]
    %v299 = vld [vmem:[#allocation5 + $0x68] sm:$0xff]
    %v300 = vld [vmem:[#allocation5 + $0x70] sm:$0xff]
    %v301 = vld [vmem:[#allocation5 + $0x78] sm:$0xff]
    %v302 = vld [vmem:[%s7] sm:$0x3]
    %v303 = vpack.c.bf16 %v285, %v285
    %v305 = vlaneseq
    %v306 = vshrl.u32 %v305, 7
    %v307 = vsub.s32 0, %v306
    %v308 = vrot.slane %v302, %v307
    %v309 = vlaneseq
    %v310 = vshrl.u32 %v309, 7
    %v311 = vsub.s32 1, %v310
    %v312 = vrot.slane %v302, %v311
    %v331 = vunpack.c.l.b16 %v286
    %v332 = vunpack.c.h.b16 %v286
    %v333 = vunpack.c.l.b16 %v287
    %v334 = vunpack.c.h.b16 %v287
    %v335 = vunpack.c.l.b16 %v288
    %v336 = vunpack.c.h.b16 %v288
    %v337 = vunpack.c.l.b16 %v289
    %v338 = vunpack.c.h.b16 %v289
    %v339 = vunpack.c.l.b16 %v290
    %v340 = vunpack.c.h.b16 %v290
    %v341 = vunpack.c.l.b16 %v291
    %v342 = vunpack.c.h.b16 %v291
    %v343 = vunpack.c.l.b16 %v292
    %v344 = vunpack.c.h.b16 %v292
    %v345 = vunpack.c.l.b16 %v293
    %v346 = vunpack.c.h.b16 %v293
    %v347 = vunpack.c.l.b16 %v294
    %v348 = vunpack.c.h.b16 %v294
    %v349 = vunpack.c.l.b16 %v295
    %v350 = vunpack.c.h.b16 %v295
    %v351 = vunpack.c.l.b16 %v296
    %v352 = vunpack.c.h.b16 %v296
    %v353 = vunpack.c.l.b16 %v297
    %v354 = vunpack.c.h.b16 %v297
    %v355 = vunpack.c.l.b16 %v298
    %v356 = vunpack.c.h.b16 %v298
    %v357 = vunpack.c.l.b16 %v299
    %v358 = vunpack.c.h.b16 %v299
    %v359 = vunpack.c.l.b16 %v300
    %v360 = vunpack.c.h.b16 %v300
    %v361 = vunpack.c.l.b16 %v301
    %v362 = vunpack.c.h.b16 %v301
    %v363 = vpack.c.b16 %v333, %v331
    %v364 = vpack.c.b16 %v334, %v332
    %v365 = vpack.c.b16 %v337, %v335
    %v366 = vpack.c.b16 %v338, %v336
    %v367 = vpack.c.b16 %v341, %v339
    %v368 = vpack.c.b16 %v342, %v340
    %v369 = vpack.c.b16 %v345, %v343
    %v370 = vpack.c.b16 %v346, %v344
    %v371 = vpack.c.b16 %v349, %v347
    %v372 = vpack.c.b16 %v350, %v348
    %v373 = vpack.c.b16 %v353, %v351
    %v374 = vpack.c.b16 %v354, %v352
    %v375 = vpack.c.b16 %v357, %v355
    %v376 = vpack.c.b16 %v358, %v356
    %v377 = vpack.c.b16 %v361, %v359
    %v378 = vpack.c.b16 %v362, %v360
    %395 = vmatprep.subr.bf16.mxu0 %v378
    %396 = vmatpush1.bf16.msra.mxu0 %v377
    %397 = vmatprep.subr.bf16.mxu0 %v376
    %398 = vmatpush1.bf16.msra.mxu0 %v375
    %399 = vmatprep.subr.bf16.mxu0 %v374
    %400 = vmatpush1.bf16.msra.mxu0 %v373
    %401 = vmatprep.subr.bf16.mxu0 %v372
    %402 = vmatpush1.bf16.msra.mxu0 %v371
    %403 = vmatprep.subr.bf16.mxu0 %v370
    %404 = vmatpush1.bf16.msra.mxu0 %v369
    %405 = vmatprep.subr.bf16.mxu0 %v368
    %406 = vmatpush1.bf16.msra.mxu0 %v367
    %407 = vmatprep.subr.bf16.mxu0 %v366
    %408 = vmatpush1.bf16.msra.mxu0 %v365
    %409 = vmatprep.subr.bf16.mxu0 %v364
    %410 = vmatpush1.bf16.msra.mxu0 %v363
    %411 = vmatprep.subr.bf16.mxu0 0
    %412 = vmatpush2.bf16.msra.mxu0 0
    %413 = vmatprep.subr.bf16.mxu0 0
    %414 = vmatpush2.bf16.msra.mxu0 0
    %415 = vmatprep.subr.bf16.mxu0 0
    %416 = vmatpush2.bf16.msra.mxu0 0
    %417 = vmatprep.subr.bf16.mxu0 0
    %418 = vmatpush2.bf16.msra.mxu0 0
    %419 = vmatprep.subr.bf16.mxu0 0
    %420 = vmatpush2.bf16.msra.mxu0 0
    %421 = vmatprep.subr.bf16.mxu0 0
    %422 = vmatpush2.bf16.msra.mxu0 0
    %423 = vmatprep.subr.bf16.mxu0 0
    %424 = vmatpush2.bf16.msra.mxu0 0
    %425 = vmatprep.subr.bf16.mxu0 0
    %426 = vmatpush2.bf16.msra.mxu0 0
    %427 = vmatprep.mubr.bf16.mxu0 0
    %428 = vmatmul.mubr.bf16.gmra.mxu0 %v303
    %v429 = vpop.f32.mrf.mxu0
    %v430 = vadd.f32 %v308, %v429
    %v431 = vpop.f32.mrf.mxu0
    %v432 = vadd.f32 %v312, %v431
    %v433 = vpop.f32.mrf.mxu0
    %v434 = vpop.f32.mrf.mxu0
    %435 = vdwg.mxu0
    %v436 = vmax.f32 %v430, 0.0
    %v437 = vmax.f32 %v432, 0.0
    %v438 = vld [vmem:[%s0] sm:$0xff]
    %vm439 = vcmp.ge.s32.totalorder %v438, 0
    %vm440 = vcmp.lt.s32.totalorder %v438, 2
    %vm441 = vmand %vm439, %vm440
    %v442 = vsel %vm441, %v438, 1
    %vm443 = vcmp.eq.s32.totalorder %v442, 0
    %v444 = vsel %vm443, 1, 0
    %445 = vset.pattern.permute.xlu0 0
    %446 = vperm.xlu0 %445, %v444
    %v447 = vpop.permute.xlu0 %446
    %vm448 = vcmp.eq.s32.totalorder %v447, 1
    %v449 = vsel %vm448, %v436, 0.0
    %v450 = vadd.f32 %v449, 0.0
    %vm451 = vcmp.eq.s32.totalorder %v442, 1
    %v452 = vsel %vm451, 1, 0
    %453 = vset.pattern.permute.xlu0 0
    %454 = vperm.xlu0 %453, %v452
    %v455 = vpop.permute.xlu0 %454
    %vm456 = vcmp.eq.s32.totalorder %v455, 1
    %v457 = vsel %vm456, %v437, 0.0
    %v458 = vadd.f32 %v450, %v457
    %459 = vst [vmem:[#allocation7] sm:$0xff] %v458
    // Predicated region
    $region42: #{pnn_classifier_forward.1} parent=1 // pred_check
      _
    $region43: #{pnn_classifier_forward.1} parent=1 // pred_check_branch
      %461 = sbr.rel (0) target = $region45
    $region44: #{pnn_classifier_forward.1} parent=1 // pred_region
      %s463 = ssub.s32 128, 128
      %464 = vsyncadd [#allocation4], %s463
      %s466 = sshll.u32 [#allocation7], 4
      %s467 = int_to_ptr.vmem [resolvable:$true] %s466
      %469 = dma.vmem_to_hbm [thread:$0]  %s467, 128, %s8, [#allocation4]
    $region45: #{pnn_classifier_forward.1} parent=1 // pred_fallthru
      _
    // Predicated region
    $region46: #{pnn_classifier_forward.1} parent=1 // pred_check
      _
    $region47: #{pnn_classifier_forward.1} parent=1 // pred_check_branch
      %471 = sbr.rel (0) target = $region49
    $region48: #{pnn_classifier_forward.1} parent=1 // pred_region
      %472 = dma.done [#allocation4], 128
    $region49: #{pnn_classifier_forward.1} parent=1 // pred_fallthru
      _
    %473 = vsyncpa [#allocation3], 1
    %474 = vsyncpa [#allocation6], 1
    %475 = vsyncpa [#allocation4], 1

</llo_original>
